<compile_context>
chip_gen: v6e
topology: v6e:2x2x1
jax: 0.10.0
libtpu: 0.0.40
codegen_flags: <defaults>
</compile_context>

<pallas_src>
import math

import jax
import jax.numpy as jnp
from jax.experimental import pallas as pl
from jax.experimental.pallas import tpu as pltpu


def vn_linear_kernel(w_ref, x_ref, o_ref):
    # w_ref: [C_out, C_in] (resident), x_ref: [C_in, TN], o_ref: [C_out, TN]
    o_ref[...] = jnp.dot(
        w_ref[...], x_ref[...], preferred_element_type=jnp.float32
    ).astype(o_ref.dtype)


# Conservative double-buffered working-set budget. 40 MiB stays inside v7x's
# 64 MiB physical VMEM per TensorCore and well inside v5e/v6e's 128 MiB once
# the scoped limit is raised via vmem_limit_bytes.
_VMEM_WORKING_SET_BUDGET = 40 * 1024 * 1024


def _choose_spatial_tile(m, c_in, c_out, itemsize):
    """Largest lane-dense spatial tile (multiple of 128) whose double-buffered
    working set (2x x-tile + 2x out-tile + 2x weight) fits the budget.

    No divisibility requirement on m: the caller uses a cdiv grid, so the last
    (possibly partial) block is padded on read and masked on store.
    """
    if m <= 128:
        # Full-extent block: satisfies the (8,128) rule via block == array dim.
        return m
    weight_bytes = 2 * c_in * c_out * itemsize          # Pallas double-buffers it
    per_lane_bytes = 2 * (c_in + c_out) * itemsize      # double-buffered x + out
    tn_max = (_VMEM_WORKING_SET_BUDGET - weight_bytes) // per_lane_bytes
    m_padded = pl.cdiv(m, 128) * 128                    # never tile past M (padded)
    tn = min(tn_max, m_padded)
    tn = max(128, (tn // 128) * 128)
    return tn


@jax.jit
def vn_linear(x, weight):
    """x: [B, C_in, *spatial] (e.g. [B, C_in, 3, N]), weight: [C_out, C_in]."""
    B, C_in = x.shape[0], x.shape[1]
    trailing = x.shape[2:]
    M = math.prod(trailing)
    C_out = weight.shape[0]
    itemsize = jnp.dtype(x.dtype).itemsize

    x2 = x.reshape(B, C_in, M)  # free reshape (contiguous layout)
    tn = _choose_spatial_tile(M, C_in, C_out, itemsize)
    num_m_tiles = pl.cdiv(M, tn)

    # Actual double-buffered working set -> explicit scoped-VMEM limit
    # (raises v5e's 16 MiB default, stays <= 48 MiB for v7x).
    working = (2 * (C_in + C_out) * tn + 2 * C_in * C_out) * itemsize
    vmem_limit = int(min(48 * 1024 * 1024,
                         max(32 * 1024 * 1024, working * 5 // 4)))

    cost = pl.CostEstimate(
        flops=2 * B * C_out * C_in * M,
        bytes_accessed=(B * (C_in + C_out) * M + C_in * C_out) * itemsize,
        transcendentals=0,
    )

    out2 = pl.pallas_call(
        vn_linear_kernel,
        out_shape=jax.ShapeDtypeStruct((B, C_out, M), x.dtype),
        grid_spec=pltpu.PrefetchScalarGridSpec(
            num_scalar_prefetch=0,
            # Large-extent M-tile axis leads so v7x's two TensorCores split it
            # even for B=1-2; both axes independent -> "parallel".
            grid=(num_m_tiles, B),
            in_specs=[
                # Weight: full block, same index every step -> stays resident.
                pl.BlockSpec((C_out, C_in), lambda j, b: (0, 0)),
                # Activations: batch dim squeezed, lane-dense spatial tile.
                pl.BlockSpec((None, C_in, tn), lambda j, b: (b, 0, j)),
            ],
            out_specs=pl.BlockSpec((None, C_out, tn), lambda j, b: (b, 0, j)),
        ),
        compiler_params=pltpu.CompilerParams(
            dimension_semantics=("parallel", "parallel"),
            vmem_limit_bytes=vmem_limit,
        ),
        cost_estimate=cost,
    )(weight, x2)

    return out2.reshape(B, C_out, *trailing)  # free reshape back


if __name__ == "__main__":
    key = jax.random.PRNGKey(0)
    kx, kw = jax.random.split(key)

    # Small shapes consistent with the module: x = [B, C_in, 3, N_samples].
    B, C_in, C_out, N = 2, 4, 8, 16
    x = jax.random.normal(kx, (B, C_in, 3, N), dtype=jnp.float32)
    # nn.Linear(in_channels, out_channels, bias=False).weight: [C_out, C_in]
    weight = jax.random.normal(kw, (C_out, C_in), dtype=jnp.float32) * 0.1

    out = vn_linear(x, weight)
    out = jax.block_until_ready(out)
    ref = jnp.einsum("oi,bidn->bodn", weight, x)
    assert out.shape == (B, C_out, 3, N)
    assert jnp.allclose(out, ref, atol=1e-5, rtol=1e-5)

    # Second check exercising the cdiv grid / padded-partial-block path
    # (M = 3*100 = 300 is not a multiple of 128).
    x2 = jax.random.normal(kx, (1, C_in, 3, 100), dtype=jnp.float32)
    out2 = jax.block_until_ready(vn_linear(x2, weight))
    ref2 = jnp.einsum("oi,bidn->bodn", weight, x2)
    assert out2.shape == (1, C_out, 3, 100)
    assert jnp.allclose(out2, ref2, atol=1e-5, rtol=1e-5)

    print("KERNEL_OK")
</pallas_src>

<mosaic_0001>
module attributes {stable_mosaic.version = 11 : i64} {
  func.func @vn_linear_kernel(%arg0: i32, %arg1: i32, %arg2: memref<8x4xf32, #tpu.memory_space<vmem>>, %arg3: memref<1x4x48xf32, #tpu.memory_space<vmem>>, %arg4: memref<1x8x48xf32, #tpu.memory_space<vmem>>) attributes {dimension_semantics = [#tpu.dimension_semantics<parallel>, #tpu.dimension_semantics<parallel>], iteration_bounds = array<i64: 1, 2>, scalar_prefetch = 0 : i64, scratch_operands = 0 : i64, tpu.core_type = #tpu.core_type<tc>, window_params = [{pipeline_mode = #tpu.pipeline_mode<synchronous>, transform_indices = @transform_0, window_bounds = array<i64: 8, 4>}, {transform_indices = @transform_1, window_bounds = array<i64: 1, 4, 48>}, {transform_indices = @transform_2, window_bounds = array<i64: 1, 8, 48>}]} {
    %c0 = arith.constant 0 : index
    %c0_0 = arith.constant 0 : index
    %0 = vector.load %arg2[%c0, %c0_0] : memref<8x4xf32, #tpu.memory_space<vmem>>, vector<8x4xf32>
    %c0_1 = arith.constant 0 : index
    %c0_2 = arith.constant 0 : index
    %c0_3 = arith.constant 0 : index
    %1 = vector.load %arg3[%c0_1, %c0_2, %c0_3] : memref<1x4x48xf32, #tpu.memory_space<vmem>>, vector<1x4x48xf32>
    %2 = vector.shape_cast %1 : vector<1x4x48xf32> to vector<4x48xf32>
    %cst = arith.constant dense<0.000000e+00> : vector<8x48xf32>
    %3 = tpu.matmul %0, %2, %cst {dimension_numbers = #tpu.dot_dimension_numbers<[1], [0], [0], [1], [0, 0, 1, 1], [], []>} : vector<8x4xf32>, vector<4x48xf32>, vector<8x48xf32> -> vector<8x48xf32>
    %c0_4 = arith.constant 0 : index
    %c0_5 = arith.constant 0 : index
    %c0_6 = arith.constant 0 : index
    %4 = vector.load %arg4[%c0_4, %c0_5, %c0_6] : memref<1x8x48xf32, #tpu.memory_space<vmem>>, vector<1x8x48xf32>
    %5 = vector.shape_cast %4 : vector<1x8x48xf32> to vector<8x48xf32>
    %6 = vector.shape_cast %3 : vector<8x48xf32> to vector<1x8x48xf32>
    tpu.vector_store %arg4[%c0_4, %c0_5, %c0_6], %6 {strides = array<i32>} : memref<1x8x48xf32, #tpu.memory_space<vmem>>, vector<1x8x48xf32>,
    return
  }
  func.func @transform_0(%arg0: i32, %arg1: i32) -> (i32, i32) {
    %c0_i32 = arith.constant 0 : i32
    %c0_i32_0 = arith.constant 0 : i32
    %c0_i32_1 = arith.constant 0 : i32
    return %c0_i32, %c0_i32_0 : i32, i32
  }
  func.func @transform_1(%arg0: i32, %arg1: i32) -> (i32, i32, i32) {
    %c0_i32 = arith.constant 0 : i32
    %c0_i32_0 = arith.constant 0 : i32
    return %arg1, %c0_i32, %arg0 : i32, i32, i32
  }
  func.func @transform_2(%arg0: i32, %arg1: i32) -> (i32, i32, i32) {
    %c0_i32 = arith.constant 0 : i32
    %c0_i32_0 = arith.constant 0 : i32
    return %arg1, %c0_i32, %arg0 : i32, i32, i32
  }
}

</mosaic_0001>

<llo_original>
// kernel: vn_linear.1
$region0: #{vn_linear.1}
  #allocation0 [shape = 'u32[]', space=smem, size = 0x4, offset = 0x4, fixed_abs, tag = 'smem constant byte address 0x4 - core index']
  #allocation1 [shape = 'u32[144,128]{1,0:T(1,128)}', space=vmem, size = 0x12000, scoped, tag = 'internal scratch']
  %s0 = inlined_call_operand.vmem [shape: f32[8,4], index: 0, kind: input, shape index: {}]
  %s1 = inlined_call_operand.vmem [shape: f32[2,4,48], index: 1, kind: input, shape index: {}]
  %s2 = inlined_call_operand.vmem [shape: f32[2,8,48], index: 2, kind: output, shape index: {}]
  %s3 = sld [smem:[#allocation0]]
  $region41: #{vn_linear.1} parent=0
    _
  %s5 = ssub.s32 1, %s3
  %s6 = scalar_select 0, %s5, %s3
  loop: start=0, step=1, limit=4
  $region2: #{vn_linear.1} parent=0 // loop_pre_header
    _
  $region3: #{vn_linear.1} parent=0 // loop_header
    %s8 = sphi 0, %s12
    %p9 = scmp.ge.s32.totalorder %s8, 4
    %s15 = sphi 0, %s27
    %s16 = sphi 0, %s23
    %s17 = sphi 0, %s15
    %s18 = sphi 0, %s16
    %s19 = sphi 0, %s17
    %s20 = sphi 0, %s18
    %s28 = sphi 0, %s28
    %s30 = sphi 0, %s28
    %s31 = sphi 0, %s30
    %s45 = sphi 0, %s31
    %s53 = sphi 0, %s55
    %s56 = sphi 0, %s53
    %s57 = sphi 0, %s56
    %s73 = sphi 0, %s57
    %s81 = sphi 0, %s83
    %s84 = sphi 0, %s81
    %s85 = sphi 0, %s84
    %s101 = sphi 0, %s85
  $region4: #{vn_linear.1} parent=0 // loop_header_branch
    %11 = sbr.rel (%p9) target = $region8
  $region5: #{vn_linear.1} parent=0 // loop_body
    %s13 = ssub.s32 %s8, 1
    %s14 = ssub.s32 %s8, 2
    %s21 = sadd.s32 1, %s16
    %p22 = scmp.ge.s32.totalorder %s21, 2
    %s23 = scalar_select %p22, 0, %s21
    %s24 = sadd.s32 1, %s15
    %s25 = scalar_select %p22, %s24, %s15
    %p26 = scmp.ge.s32.totalorder %s25, 1
    %s27 = scalar_select %p26, 0, %s25
    %s29 = sadd.s32 %s28, 1
    %p32 = scmp.eq.s32.totalorder %s8, 1
    %p33 = scmp.ne.s32.totalorder %s28, %s30
    %p34 = scmp.eq.s32.totalorder %s8, 0
    %p35 = por %p33, %p34
    %p36 = scmp.ne.s32.totalorder %s28, %s30
    %p37 = scmp.eq.s32.totalorder %s13, 1
    %p38 = por %p36, %p37
    %p39 = scmp.ne.s32.totalorder %s30, %s31
    %p40 = scmp.eq.s32.totalorder %s13, 0
    %p41 = por %p39, %p40
    %p42 = scmp.ne.s32.totalorder %s30, %s31
    %p43 = scmp.eq.s32.totalorder %s14, 1
    %p44 = por %p42, %p43
    %p46 = scmp.ne.s32.totalorder %s31, %s45
    %p47 = scmp.eq.s32.totalorder %s14, 0
    %p48 = por %p46, %p47
    %s49 = ssub.s32 %s16, %s23
    %s50 = ssub.s32 %s15, %s27
    %s51 = sor.u32 %s49, %s50
    %p52 = scmp.eq.s32.totalorder %s51, 0
    %s54 = sadd.s32 %s53, 1
    %s55 = scalar_select %p52, %s53, %s54
    %p58 = pneg %p52
    %p59 = scmp.eq.s32.totalorder %s8, 1
    %p60 = por %p58, %p59
    %p61 = scmp.ne.s32.totalorder %s53, %s56
    %p62 = scmp.eq.s32.totalorder %s8, 0
    %p63 = por %p61, %p62
    %p64 = scmp.ne.s32.totalorder %s53, %s56
    %p65 = scmp.eq.s32.totalorder %s13, 1
    %p66 = por %p64, %p65
    %p67 = scmp.ne.s32.totalorder %s56, %s57
    %p68 = scmp.eq.s32.totalorder %s13, 0
    %p69 = por %p67, %p68
    %p70 = scmp.ne.s32.totalorder %s56, %s57
    %p71 = scmp.eq.s32.totalorder %s14, 1
    %p72 = por %p70, %p71
    %p74 = scmp.ne.s32.totalorder %s57, %s73
    %p75 = scmp.eq.s32.totalorder %s14, 0
    %p76 = por %p74, %p75
    %s77 = ssub.s32 %s16, %s23
    %s78 = ssub.s32 %s15, %s27
    %s79 = sor.u32 %s77, %s78
    %p80 = scmp.eq.s32.totalorder %s79, 0
    %s82 = sadd.s32 %s81, 1
    %s83 = scalar_select %p80, %s81, %s82
    %p86 = pneg %p80
    %p87 = scmp.eq.s32.totalorder %s8, 1
    %p88 = por %p86, %p87
    %p89 = scmp.ne.s32.totalorder %s81, %s84
    %p90 = scmp.eq.s32.totalorder %s8, 0
    %p91 = por %p89, %p90
    %p92 = scmp.ne.s32.totalorder %s81, %s84
    %p93 = scmp.eq.s32.totalorder %s13, 1
    %p94 = por %p92, %p93
    %p95 = scmp.ne.s32.totalorder %s84, %s85
    %p96 = scmp.eq.s32.totalorder %s13, 0
    %p97 = por %p95, %p96
    %p98 = scmp.ne.s32.totalorder %s84, %s85
    %p99 = scmp.eq.s32.totalorder %s14, 1
    %p100 = por %p98, %p99
    %p102 = scmp.ne.s32.totalorder %s85, %s101
    %p103 = scmp.eq.s32.totalorder %s14, 0
    %p104 = por %p102, %p103
    %p105 = scmp.le.s32.totalorder 1, %s8
    %p106 = scmp.lt.s32.totalorder %s8, 3
    %p107 = pnand %p105, %p106
    %p108 = pneg %p107
    // Predicated region
    $region9: #{vn_linear.1} parent=5 // pred_check
      _
    $region10: #{vn_linear.1} parent=5 // pred_check_branch
      %110 = sbr.rel (%p107) target = $region12
    $region11: #{vn_linear.1} parent=5 // pred_region
      %s111 = ssub.s32 %s8, 1
      // Predicated region
      $region13: #{vn_linear.1} parent=11 // pred_check
        %p112 = pneg %p41
      $region14: #{vn_linear.1} parent=11 // pred_check_branch
        %114 = sbr.rel (%p112) target = $region16
      $region15: #{vn_linear.1} parent=11 // pred_region
        _
      $region16: #{vn_linear.1} parent=11 // pred_fallthru
        _
    $region12: #{vn_linear.1} parent=5 // pred_fallthru
      _
    %p115 = scmp.lt.s32.totalorder %s8, 2
    // Predicated region
    $region17: #{vn_linear.1} parent=5 // pred_check
      %p116 = pneg %p115
    $region18: #{vn_linear.1} parent=5 // pred_check_branch
      %118 = sbr.rel (%p116) target = $region20
    $region19: #{vn_linear.1} parent=5 // pred_region
      // Predicated region
      $region21: #{vn_linear.1} parent=19 // pred_check
        %p119 = pneg %p63
      $region22: #{vn_linear.1} parent=19 // pred_check_branch
        %121 = sbr.rel (%p119) target = $region24
      $region23: #{vn_linear.1} parent=19 // pred_region
        %p122 = scmp.lt.s32.totalorder %s16, 1
        %s123 = scalar_select %p122, %s16, 1
        %p124 = scmp.lt.s32.totalorder %s15, 0
        %s125 = scalar_select %p124, %s15, 0
        %s126 = sadd.s32 %s125, %s123
        %s127 = smul.addr %s126, 4
        %s128 = scalar_lea.vmem %s1, %s127
      $region24: #{vn_linear.1} parent=19 // pred_fallthru
        _
    $region20: #{vn_linear.1} parent=5 // pred_fallthru
      _
    %p129 = scmp.le.s32.totalorder 1, %s8
    %p130 = scmp.lt.s32.totalorder %s8, 3
    %p131 = pnand %p129, %p130
    %p132 = pneg %p131
    // Predicated region
    $region25: #{vn_linear.1} parent=5 // pred_check
      _
    $region26: #{vn_linear.1} parent=5 // pred_check_branch
      %134 = sbr.rel (%p131) target = $region28
    $region27: #{vn_linear.1} parent=5 // pred_region
      %s135 = ssub.s32 %s8, 1
      %p136 = pneg %p41
      %p137 = pneg %p38
      %p138 = scmp.lt.s32.totalorder %s18, 1
      %s139 = scalar_select %p138, %s18, 1
      %p140 = scmp.lt.s32.totalorder %s17, 0
      %s141 = scalar_select %p140, %s17, 0
      %s142 = sadd.s32 %s141, %s139
      %s143 = smul.addr %s142, 4
      %s144 = scalar_lea.vmem %s1, %s143
      %p145 = pneg %p69
      %p146 = pneg %p66
      %p147 = pneg %p97
      %p148 = pneg %p94
      %p149 = scmp.lt.s32.totalorder %s18, 1
      %s150 = scalar_select %p149, %s18, 1
      %p151 = scmp.lt.s32.totalorder %s17, 0
      %s152 = scalar_select %p151, %s17, 0
      %s153 = sadd.s32 %s152, %s150
      %s154 = smul.addr %s153, 8
      %s155 = scalar_lea.vmem %s2, %s154
      %p156 = scmp.lt.s32.totalorder %s18, 1
      %s157 = scalar_select %p156, %s18, 1
      %p158 = scmp.lt.s32.totalorder %s17, 0
      %s159 = scalar_select %p158, %s17, 0
      %s160 = sadd.s32 %s159, %s157
      %s161 = smul.addr %s160, 4
      %s162 = scalar_lea.vmem %s1, %s161
      %p163 = scmp.lt.s32.totalorder %s18, 1
      %s164 = scalar_select %p163, %s18, 1
      %p165 = scmp.lt.s32.totalorder %s17, 0
      %s166 = scalar_select %p165, %s17, 0
      %s167 = sadd.s32 %s166, %s164
      %s168 = smul.addr %s167, 8
      %s169 = scalar_lea.vmem %s2, %s168
      %v170 = vld [vmem:[%s0] sm:$0xff]
      %v171 = vld [vmem:[%s162] sm:$0xf]
      %vm172 = vcmask 31744
      %v174 = vsel %vm172, %v170, 0
      %vm176 = vcmask 1043456
      %v178 = vsel %vm176, %v171, 0
      %180 = vmatprep.subr.mxu0 0.0
      %181 = vmatpush1.msra.mxu0 0.0
      %182 = vmatprep.subr.mxu0 0.0
      %183 = vmatpush1.msra.mxu0 0.0
      %184 = vmatprep.subr.mxu0 0.0
      %185 = vmatpush1.msra.mxu0 0.0
      %186 = vmatprep.subr.mxu0 0.0
      %187 = vmatpush1.msra.mxu0 0.0
      %188 = vmatprep.subr.mxu0 0.0
      %189 = vmatpush1.msra.mxu0 0.0
      %190 = vmatprep.subr.mxu0 0.0
      %191 = vmatpush1.msra.mxu0 0.0
      %192 = vmatprep.subr.mxu0 0.0
      %193 = vmatpush1.msra.mxu0 0.0
      %194 = vmatprep.subr.mxu0 0.0
      %195 = vmatpush1.msra.mxu0 0.0
      %196 = vmatprep.subr.mxu0 0.0
      %197 = vmatpush1.msra.mxu0 0.0
      %198 = vmatprep.subr.mxu0 0.0
      %199 = vmatpush1.msra.mxu0 0.0
      %200 = vmatprep.subr.mxu0 0.0
      %201 = vmatpush1.msra.mxu0 0.0
      %202 = vmatprep.subr.mxu0 0.0
      %203 = vmatpush1.msra.mxu0 0.0
      %204 = vmatprep.subr.mxu0 0.0
      %205 = vmatpush1.msra.mxu0 0.0
      %206 = vmatprep.subr.mxu0 0.0
      %207 = vmatpush1.msra.mxu0 0.0
      %208 = vmatprep.subr.mxu0 0.0
      %209 = vmatpush1.msra.mxu0 0.0
      %210 = vmatprep.subr.mxu0 0.0
      %211 = vmatpush1.msra.mxu0 %v178
      %212 = vmatprep.subr.mxu0 0.0
      %213 = vmatpush2.msra.mxu0 0.0
      %214 = vmatprep.subr.mxu0 0.0
      %215 = vmatpush2.msra.mxu0 0.0
      %216 = vmatprep.subr.mxu0 0.0
      %217 = vmatpush2.msra.mxu0 0.0
      %218 = vmatprep.subr.mxu0 0.0
      %219 = vmatpush2.msra.mxu0 0.0
      %220 = vmatprep.subr.mxu0 0.0
      %221 = vmatpush2.msra.mxu0 0.0
      %222 = vmatprep.subr.mxu0 0.0
      %223 = vmatpush2.msra.mxu0 0.0
      %224 = vmatprep.subr.mxu0 0.0
      %225 = vmatpush2.msra.mxu0 0.0
      %226 = vmatprep.subr.mxu0 0.0
      %227 = vmatpush2.msra.mxu0 0.0
      %228 = vmatprep.subr.mxu0 0.0
      %229 = vmatpush2.msra.mxu0 0.0
      %230 = vmatprep.subr.mxu0 0.0
      %231 = vmatpush2.msra.mxu0 0.0
      %232 = vmatprep.subr.mxu0 0.0
      %233 = vmatpush2.msra.mxu0 0.0
      %234 = vmatprep.subr.mxu0 0.0
      %235 = vmatpush2.msra.mxu0 0.0
      %236 = vmatprep.subr.mxu0 0.0
      %237 = vmatpush2.msra.mxu0 0.0
      %238 = vmatprep.subr.mxu0 0.0
      %239 = vmatpush2.msra.mxu0 0.0
      %240 = vmatprep.subr.mxu0 0.0
      %241 = vmatpush2.msra.mxu0 0.0
      %242 = vmatprep.subr.mxu0 0.0
      %243 = vmatpush2.msra.mxu0 0.0
      %244 = vmatprep.mubr.f32.mxu0 0.0
      %245 = vmatmul.mubr.f32.gmra.mxu0 %v174
      %v246 = vpop.f32.mrf.mxu0
      %v247 = vadd.f32 0.0, %v246
      %v248 = vpop.f32.mrf.mxu0
      %249 = vdwg.mxu0
      %vm250 = vcmask 392192
      %251 = vst.msk [vmem:[%s169] sm:$0xff] %vm250, %v247
      %p252 = scmp.lt.s32.totalorder %s18, 1
      %s253 = scalar_select %p252, %s18, 1
      %p254 = scmp.lt.s32.totalorder %s17, 0
      %s255 = scalar_select %p254, %s17, 0
      %s256 = sadd.s32 %s255, %s253
      %s257 = smul.addr %s256, 8
      %s258 = scalar_lea.vmem %s2, %s257
      // Predicated region
      $region29: #{vn_linear.1} parent=27 // pred_check
        %p259 = pneg %p94
      $region30: #{vn_linear.1} parent=27 // pred_check_branch
        %261 = sbr.rel (%p259) target = $region32
      $region31: #{vn_linear.1} parent=27 // pred_region
        _
      $region32: #{vn_linear.1} parent=27 // pred_fallthru
        _
    $region28: #{vn_linear.1} parent=5 // pred_fallthru
      _
    %p262 = scmp.le.s32.totalorder 2, %s8
    // Predicated region
    $region33: #{vn_linear.1} parent=5 // pred_check
      %p263 = pneg %p262
    $region34: #{vn_linear.1} parent=5 // pred_check_branch
      %265 = sbr.rel (%p263) target = $region36
    $region35: #{vn_linear.1} parent=5 // pred_region
      %s266 = ssub.s32 %s8, 2
      // Predicated region
      $region37: #{vn_linear.1} parent=35 // pred_check
        %p267 = pneg %p100
      $region38: #{vn_linear.1} parent=35 // pred_check_branch
        %269 = sbr.rel (%p267) target = $region40
      $region39: #{vn_linear.1} parent=35 // pred_region
        %p270 = scmp.lt.s32.totalorder %s20, 1
        %s271 = scalar_select %p270, %s20, 1
        %p272 = scmp.lt.s32.totalorder %s19, 0
        %s273 = scalar_select %p272, %s19, 0
        %s274 = sadd.s32 %s273, %s271
        %s275 = smul.addr %s274, 8
        %s276 = scalar_lea.vmem %s2, %s275
      $region40: #{vn_linear.1} parent=35 // pred_fallthru
        _
    $region36: #{vn_linear.1} parent=5 // pred_fallthru
      _
  $region6: #{vn_linear.1} parent=0 // loop_footer
    %s12 = sadd.s32 1, %s8
  $region7: #{vn_linear.1} parent=0 // loop_footer_branch
    %7 = sbr.rel target = $region3
  $region8: #{vn_linear.1} parent=0 // loop_exit
    _

</llo_original>
